<compile_context>
chip_gen: v6e
topology: v6e:2x2x1
jax: 0.10.0
libtpu: 0.0.40
codegen_flags: <defaults>
</compile_context>

<pallas_src>
import jax
import jax.numpy as jnp
from jax.experimental import pallas as pl
from jax.experimental.pallas import tpu as pltpu


def _round_up(x, m):
    return ((x + m - 1) // m) * m


def _plddt_kernel(x_ref, mask_ref, gamma_ref, beta_ref,
                  w1_ref, b1_ref, w2_ref, b2_ref, w3_ref, b3_ref, binval_ref,
                  logits_ref, bins_ref, conf_ref):
    # ---- LayerNorm over feature dim (two-pass stats, numerically robust) ----
    x = x_ref[...].astype(jnp.float32)                       # [TM, D]
    mean = jnp.mean(x, axis=-1, keepdims=True)
    xc = x - mean
    var = jnp.mean(xc * xc, axis=-1, keepdims=True)
    xn = xc * jax.lax.rsqrt(var + 1e-5)
    xn = xn * gamma_ref[...] + beta_ref[...]                  # [TM, D]

    # ---- 3-layer MLP (Dropout == identity in eval mode) ----
    h1 = jnp.dot(xn, w1_ref[...], preferred_element_type=jnp.float32) + b1_ref[...]
    h1 = jnp.maximum(h1, 0.0)                                 # [TM, H]
    h2 = jnp.dot(h1, w2_ref[...], preferred_element_type=jnp.float32) + b2_ref[...]
    h2 = jnp.maximum(h2, 0.0)                                 # [TM, H]
    logits = jnp.dot(h2, w3_ref[...], preferred_element_type=jnp.float32) + b3_ref[...]  # [TM, NB]

    # ---- softmax over the real NB bins (exact divide) ----
    m = jnp.max(logits, axis=-1, keepdims=True)
    e = jnp.exp(logits - m)
    denom = jnp.sum(e, axis=-1, keepdims=True)
    bins = e / denom                                          # [TM, NB]

    # ---- fused epilogue: expected pLDDT + masking, data already in vregs ----
    msk = mask_ref[...].astype(jnp.float32)                   # [TM, 1]
    conf = jnp.sum(bins * binval_ref[...], axis=-1, keepdims=True) * msk

    logits_ref[...] = logits
    bins_ref[...] = bins * msk
    conf_ref[...] = conf


@jax.jit
def plddt_forward(representations, mask, params):
    """representations: [B, N, D]; mask: [B, N] (or None); returns dict."""
    B, N, D = representations.shape
    M = B * N
    H = params["w1"].shape[1]
    NB = params["w3"].shape[1]

    # Row tile: multiple of 8, large enough to amortize the ~0.35us per-step
    # pipeline overhead, but capped so there are >= 2 grid steps whenever M
    # allows (v7x dual-TC sharding; one extra tiny step is noise on v5e/v6e).
    TILE_M = 2048
    tm = min(TILE_M, _round_up(max((M + 1) // 2, 8), 8))
    M_pad = _round_up(M, tm)
    grid_m = M_pad // tm

    x2d = representations.reshape(M, D)                       # native dtype
    if mask is None:
        mask2d = jnp.ones((M, 1), jnp.float32)
    else:
        mask2d = mask.reshape(M, 1)
    if M_pad != M:
        x2d = jnp.pad(x2d, ((0, M_pad - M), (0, 0)))
        mask2d = jnp.pad(mask2d, ((0, M_pad - M), (0, 0)))

    bin_values = jnp.linspace(0.0, 100.0, NB, dtype=jnp.float32).reshape(1, NB)

    row_x = pl.BlockSpec((tm, D), lambda i: (i, 0))
    row_m = pl.BlockSpec((tm, 1), lambda i: (i, 0))
    out_nb = pl.BlockSpec((tm, NB), lambda i: (i, 0))
    out_1 = pl.BlockSpec((tm, 1), lambda i: (i, 0))
    const = lambda shape: pl.BlockSpec(shape, lambda i: (0, 0))   # resident params
    # TODO(synk): at production D/H, put pipeline_mode=pl.Buffered(1) on the
    # resident weight specs to skip their (pointless) double buffer on v7x.

    # VMEM budget: lane-padded double-buffered I/O tiles + resident params +
    # live intermediates, 2x headroom, capped well under v7x's 64 MiB.
    lane = 128
    nbp, dp, hp = _round_up(NB, lane), _round_up(D, lane), _round_up(H, lane)
    xb = jnp.dtype(x2d.dtype).itemsize
    step_bytes = (2 * tm * dp * xb + 2 * tm * lane * 4            # x, mask
                  + 2 * tm * nbp * 4 * 2 + 2 * tm * lane * 4)     # logits, bins, conf
    param_bytes = 2 * 4 * (2 * dp + dp * hp + hp * hp + 2 * hp + hp * nbp + 2 * nbp)
    live_bytes = tm * 4 * (2 * dp + 2 * hp + 2 * nbp)
    vmem_limit = int(min(56 << 20, max(16 << 20,
                                       2 * (step_bytes + param_bytes + live_bytes))))

    cost = pl.CostEstimate(
        flops=2 * M_pad * (D * H + H * H + H * NB) + 10 * M_pad * (D + NB),
        transcendentals=M_pad * (NB + 1),
        bytes_accessed=(M_pad * D * xb + 4 * M_pad * (2 * NB + 2)
                        + 4 * (D * H + H * H + H * NB + 2 * D + 2 * H + 2 * NB)),
    )

    logits2d, bins2d, conf2d = pl.pallas_call(
        _plddt_kernel,
        grid=(grid_m,),
        out_shape=(
            jax.ShapeDtypeStruct((M_pad, NB), jnp.float32),
            jax.ShapeDtypeStruct((M_pad, NB), jnp.float32),
            jax.ShapeDtypeStruct((M_pad, 1), jnp.float32),
        ),
        in_specs=[
            row_x, row_m,                       # pipelined row tiles
            const((1, D)), const((1, D)),       # gamma, beta
            const((D, H)), const((1, H)),       # w1, b1
            const((H, H)), const((1, H)),       # w2, b2
            const((H, NB)), const((1, NB)),     # w3, b3
            const((1, NB)),                     # bin_values
        ],
        out_specs=(out_nb, out_nb, out_1),
        compiler_params=pltpu.CompilerParams(
            dimension_semantics=("parallel",),
            vmem_limit_bytes=vmem_limit,
        ),
        cost_estimate=cost,
    )(
        x2d, mask2d,
        params["gamma"].reshape(1, D).astype(jnp.float32),
        params["beta"].reshape(1, D).astype(jnp.float32),
        params["w1"].astype(jnp.float32), params["b1"].reshape(1, H).astype(jnp.float32),
        params["w2"].astype(jnp.float32), params["b2"].reshape(1, H).astype(jnp.float32),
        params["w3"].astype(jnp.float32), params["b3"].reshape(1, NB).astype(jnp.float32),
        bin_values,
    )

    logits = logits2d[:M].reshape(B, N, NB)
    bins = bins2d[:M].reshape(B, N, NB)
    confidences = conf2d[:M, 0].reshape(B, N)
    return {"logits": logits, "confidences": confidences, "bins": bins}


def init_params(key, input_dim, hidden_dim, num_bins):
    ks = jax.random.split(key, 6)
    s1 = 1.0 / jnp.sqrt(input_dim)
    s2 = 1.0 / jnp.sqrt(hidden_dim)
    return {
        "gamma": jnp.ones((input_dim,), jnp.float32),
        "beta": jnp.zeros((input_dim,), jnp.float32),
        "w1": jax.random.uniform(ks[0], (input_dim, hidden_dim), jnp.float32, -s1, s1),
        "b1": jax.random.uniform(ks[1], (hidden_dim,), jnp.float32, -s1, s1),
        "w2": jax.random.uniform(ks[2], (hidden_dim, hidden_dim), jnp.float32, -s2, s2),
        "b2": jax.random.uniform(ks[3], (hidden_dim,), jnp.float32, -s2, s2),
        "w3": jax.random.uniform(ks[4], (hidden_dim, num_bins), jnp.float32, -s2, s2),
        "b3": jax.random.uniform(ks[5], (num_bins,), jnp.float32, -s2, s2),
    }


def _reference(representations, mask, params, num_bins):
    x = representations.astype(jnp.float32)
    mean = jnp.mean(x, axis=-1, keepdims=True)
    var = jnp.mean((x - mean) ** 2, axis=-1, keepdims=True)
    xn = (x - mean) / jnp.sqrt(var + 1e-5) * params["gamma"] + params["beta"]
    h1 = jax.nn.relu(xn @ params["w1"] + params["b1"])
    h2 = jax.nn.relu(h1 @ params["w2"] + params["b2"])
    logits = h2 @ params["w3"] + params["b3"]
    bins = jax.nn.softmax(logits, axis=-1)
    bin_values = jnp.linspace(0.0, 100.0, num_bins)
    conf = jnp.sum(bins * bin_values, axis=-1) * mask
    bins = bins * mask[..., None]
    return logits, conf, bins


if __name__ == "__main__":
    B, N, D, H, NB = 2, 8, 32, 32, 50

    key = jax.random.PRNGKey(0)
    k_x, k_m, k_p = jax.random.split(key, 3)
    representations = jax.random.normal(k_x, (B, N, D), jnp.float32)
    mask = (jax.random.uniform(k_m, (B, N)) > 0.2).astype(jnp.float32)
    params = init_params(k_p, D, H, NB)

    out = plddt_forward(representations, mask, params)
    jax.block_until_ready(out)

    ref_logits, ref_conf, ref_bins = _reference(representations, mask, params, NB)
    assert jnp.allclose(out["logits"], ref_logits, atol=1e-4, rtol=1e-4)
    assert jnp.allclose(out["confidences"], ref_conf, atol=1e-3, rtol=1e-4)
    assert jnp.allclose(out["bins"], ref_bins, atol=1e-5, rtol=1e-4)

    print("KERNEL_OK")
</pallas_src>

<mosaic_0001>
module attributes {stable_mosaic.version = 11 : i64} {
  func.func @_plddt_kernel(%arg0: i32, %arg1: memref<8x32xf32, #tpu.memory_space<vmem>>, %arg2: memref<8x1xf32, #tpu.memory_space<vmem>>, %arg3: memref<1x32xf32, #tpu.memory_space<vmem>>, %arg4: memref<1x32xf32, #tpu.memory_space<vmem>>, %arg5: memref<32x32xf32, #tpu.memory_space<vmem>>, %arg6: memref<1x32xf32, #tpu.memory_space<vmem>>, %arg7: memref<32x32xf32, #tpu.memory_space<vmem>>, %arg8: memref<1x32xf32, #tpu.memory_space<vmem>>, %arg9: memref<32x50xf32, #tpu.memory_space<vmem>>, %arg10: memref<1x50xf32, #tpu.memory_space<vmem>>, %arg11: memref<1x50xf32, #tpu.memory_space<vmem>>, %arg12: memref<8x50xf32, #tpu.memory_space<vmem>>, %arg13: memref<8x50xf32, #tpu.memory_space<vmem>>, %arg14: memref<8x1xf32, #tpu.memory_space<vmem>>) attributes {dimension_semantics = [#tpu.dimension_semantics<parallel>], iteration_bounds = array<i64: 2>, scalar_prefetch = 0 : i64, scratch_operands = 0 : i64, tpu.core_type = #tpu.core_type<tc>, window_params = [{transform_indices = @transform_0, window_bounds = array<i64: 8, 32>}, {transform_indices = @transform_1, window_bounds = array<i64: 8, 1>}, {pipeline_mode = #tpu.pipeline_mode<synchronous>, transform_indices = @transform_2, window_bounds = array<i64: 1, 32>}, {pipeline_mode = #tpu.pipeline_mode<synchronous>, transform_indices = @transform_3, window_bounds = array<i64: 1, 32>}, {pipeline_mode = #tpu.pipeline_mode<synchronous>, transform_indices = @transform_4, window_bounds = array<i64: 32, 32>}, {pipeline_mode = #tpu.pipeline_mode<synchronous>, transform_indices = @transform_5, window_bounds = array<i64: 1, 32>}, {pipeline_mode = #tpu.pipeline_mode<synchronous>, transform_indices = @transform_6, window_bounds = array<i64: 32, 32>}, {pipeline_mode = #tpu.pipeline_mode<synchronous>, transform_indices = @transform_7, window_bounds = array<i64: 1, 32>}, {pipeline_mode = #tpu.pipeline_mode<synchronous>, transform_indices = @transform_8, window_bounds = array<i64: 32, 50>}, {pipeline_mode = #tpu.pipeline_mode<synchronous>, transform_indices = @transform_9, window_bounds = array<i64: 1, 50>}, {pipeline_mode = #tpu.pipeline_mode<synchronous>, transform_indices = @transform_10, window_bounds = array<i64: 1, 50>}, {transform_indices = @transform_11, window_bounds = array<i64: 8, 50>}, {transform_indices = @transform_12, window_bounds = array<i64: 8, 50>}, {transform_indices = @transform_13, window_bounds = array<i64: 8, 1>}]} {
    %c0 = arith.constant 0 : index
    %c0_0 = arith.constant 0 : index
    %0 = vector.load %arg1[%c0, %c0_0] : memref<8x32xf32, #tpu.memory_space<vmem>>, vector<8x32xf32>
    %cst = arith.constant dense<0.000000e+00> : vector<8xf32>
    %1 = vector.multi_reduction <add>, %0, %cst [1] : vector<8x32xf32> to vector<8xf32>
    %2 = vector.shape_cast %1 : vector<8xf32> to vector<8x1xf32>
    %cst_1 = arith.constant 3.200000e+01 : f32
    %3 = vector.broadcast %cst_1 : f32 to vector<8x1xf32>
    %4 = arith.divf %2, %3 : vector<8x1xf32>
    %5 = vector.broadcast %4 : vector<8x1xf32> to vector<8x32xf32>
    %6 = arith.subf %0, %5 : vector<8x32xf32>
    %7 = arith.mulf %6, %6 : vector<8x32xf32>
    %cst_2 = arith.constant dense<0.000000e+00> : vector<8xf32>
    %8 = vector.multi_reduction <add>, %7, %cst_2 [1] : vector<8x32xf32> to vector<8xf32>
    %9 = vector.shape_cast %8 : vector<8xf32> to vector<8x1xf32>
    %cst_3 = arith.constant 3.200000e+01 : f32
    %10 = vector.broadcast %cst_3 : f32 to vector<8x1xf32>
    %11 = arith.divf %9, %10 : vector<8x1xf32>
    %cst_4 = arith.constant 9.99999974E-6 : f32
    %12 = vector.broadcast %cst_4 : f32 to vector<8x1xf32>
    %13 = arith.addf %11, %12 : vector<8x1xf32>
    %14 = math.rsqrt %13 : vector<8x1xf32>
    %15 = vector.broadcast %14 : vector<8x1xf32> to vector<8x32xf32>
    %16 = arith.mulf %6, %15 : vector<8x32xf32>
    %c0_5 = arith.constant 0 : index
    %c0_6 = arith.constant 0 : index
    %17 = vector.load %arg3[%c0_5, %c0_6] : memref<1x32xf32, #tpu.memory_space<vmem>>, vector<1x32xf32>
    %18 = vector.broadcast %17 : vector<1x32xf32> to vector<8x32xf32>
    %19 = arith.mulf %16, %18 : vector<8x32xf32>
    %c0_7 = arith.constant 0 : index
    %c0_8 = arith.constant 0 : index
    %20 = vector.load %arg4[%c0_7, %c0_8] : memref<1x32xf32, #tpu.memory_space<vmem>>, vector<1x32xf32>
    %21 = vector.broadcast %20 : vector<1x32xf32> to vector<8x32xf32>
    %22 = arith.addf %19, %21 : vector<8x32xf32>
    %c0_9 = arith.constant 0 : index
    %c0_10 = arith.constant 0 : index
    %23 = vector.load %arg5[%c0_9, %c0_10] : memref<32x32xf32, #tpu.memory_space<vmem>>, vector<32x32xf32>
    %cst_11 = arith.constant dense<0.000000e+00> : vector<8x32xf32>
    %24 = tpu.matmul %22, %23, %cst_11 {dimension_numbers = #tpu.dot_dimension_numbers<[1], [0], [0], [1], [0, 0, 1, 1], [], []>} : vector<8x32xf32>, vector<32x32xf32>, vector<8x32xf32> -> vector<8x32xf32>
    %c0_12 = arith.constant 0 : index
    %c0_13 = arith.constant 0 : index
    %25 = vector.load %arg6[%c0_12, %c0_13] : memref<1x32xf32, #tpu.memory_space<vmem>>, vector<1x32xf32>
    %26 = vector.broadcast %25 : vector<1x32xf32> to vector<8x32xf32>
    %27 = arith.addf %24, %26 : vector<8x32xf32>
    %cst_14 = arith.constant 0.000000e+00 : f32
    %28 = vector.broadcast %cst_14 : f32 to vector<8x32xf32>
    %29 = arith.maximumf %27, %28 : vector<8x32xf32>
    %c0_15 = arith.constant 0 : index
    %c0_16 = arith.constant 0 : index
    %30 = vector.load %arg7[%c0_15, %c0_16] : memref<32x32xf32, #tpu.memory_space<vmem>>, vector<32x32xf32>
    %cst_17 = arith.constant dense<0.000000e+00> : vector<8x32xf32>
    %31 = tpu.matmul %29, %30, %cst_17 {dimension_numbers = #tpu.dot_dimension_numbers<[1], [0], [0], [1], [0, 0, 1, 1], [], []>} : vector<8x32xf32>, vector<32x32xf32>, vector<8x32xf32> -> vector<8x32xf32>
    %c0_18 = arith.constant 0 : index
    %c0_19 = arith.constant 0 : index
    %32 = vector.load %arg8[%c0_18, %c0_19] : memref<1x32xf32, #tpu.memory_space<vmem>>, vector<1x32xf32>
    %33 = vector.broadcast %32 : vector<1x32xf32> to vector<8x32xf32>
    %34 = arith.addf %31, %33 : vector<8x32xf32>
    %cst_20 = arith.constant 0.000000e+00 : f32
    %35 = vector.broadcast %cst_20 : f32 to vector<8x32xf32>
    %36 = arith.maximumf %34, %35 : vector<8x32xf32>
    %c0_21 = arith.constant 0 : index
    %c0_22 = arith.constant 0 : index
    %37 = vector.load %arg9[%c0_21, %c0_22] : memref<32x50xf32, #tpu.memory_space<vmem>>, vector<32x50xf32>
    %cst_23 = arith.constant dense<0.000000e+00> : vector<8x50xf32>
    %38 = tpu.matmul %36, %37, %cst_23 {dimension_numbers = #tpu.dot_dimension_numbers<[1], [0], [0], [1], [0, 0, 1, 1], [], []>} : vector<8x32xf32>, vector<32x50xf32>, vector<8x50xf32> -> vector<8x50xf32>
    %c0_24 = arith.constant 0 : index
    %c0_25 = arith.constant 0 : index
    %39 = vector.load %arg10[%c0_24, %c0_25] : memref<1x50xf32, #tpu.memory_space<vmem>>, vector<1x50xf32>
    %40 = vector.broadcast %39 : vector<1x50xf32> to vector<8x50xf32>
    %41 = arith.addf %38, %40 : vector<8x50xf32>
    %cst_26 = arith.constant dense<0xFF800000> : vector<8xf32>
    %42 = vector.multi_reduction <maximumf>, %41, %cst_26 [1] : vector<8x50xf32> to vector<8xf32>
    %43 = vector.shape_cast %42 : vector<8xf32> to vector<8x1xf32>
    %44 = vector.broadcast %43 : vector<8x1xf32> to vector<8x50xf32>
    %45 = arith.subf %41, %44 : vector<8x50xf32>
    %46 = math.exp %45 : vector<8x50xf32>
    %cst_27 = arith.constant dense<0.000000e+00> : vector<8xf32>
    %47 = vector.multi_reduction <add>, %46, %cst_27 [1] : vector<8x50xf32> to vector<8xf32>
    %48 = vector.shape_cast %47 : vector<8xf32> to vector<8x1xf32>
    %49 = vector.broadcast %48 : vector<8x1xf32> to vector<8x50xf32>
    %50 = arith.divf %46, %49 : vector<8x50xf32>
    %c0_28 = arith.constant 0 : index
    %c0_29 = arith.constant 0 : index
    %51 = vector.load %arg2[%c0_28, %c0_29] : memref<8x1xf32, #tpu.memory_space<vmem>>, vector<8x1xf32>
    %c0_30 = arith.constant 0 : index
    %c0_31 = arith.constant 0 : index
    %52 = vector.load %arg11[%c0_30, %c0_31] : memref<1x50xf32, #tpu.memory_space<vmem>>, vector<1x50xf32>
    %53 = vector.broadcast %52 : vector<1x50xf32> to vector<8x50xf32>
    %54 = arith.mulf %50, %53 : vector<8x50xf32>
    %cst_32 = arith.constant dense<0.000000e+00> : vector<8xf32>
    %55 = vector.multi_reduction <add>, %54, %cst_32 [1] : vector<8x50xf32> to vector<8xf32>
    %56 = vector.shape_cast %55 : vector<8xf32> to vector<8x1xf32>
    %57 = arith.mulf %56, %51 : vector<8x1xf32>
    %c0_33 = arith.constant 0 : index
    %c0_34 = arith.constant 0 : index
    %58 = vector.load %arg12[%c0_33, %c0_34] : memref<8x50xf32, #tpu.memory_space<vmem>>, vector<8x50xf32>
    tpu.vector_store %arg12[%c0_33, %c0_34], %41 {strides = array<i32>} : memref<8x50xf32, #tpu.memory_space<vmem>>, vector<8x50xf32>,
    %59 = vector.broadcast %51 : vector<8x1xf32> to vector<8x50xf32>
    %60 = arith.mulf %50, %59 : vector<8x50xf32>
    %c0_35 = arith.constant 0 : index
    %c0_36 = arith.constant 0 : index
    %61 = vector.load %arg13[%c0_35, %c0_36] : memref<8x50xf32, #tpu.memory_space<vmem>>, vector<8x50xf32>
    tpu.vector_store %arg13[%c0_35, %c0_36], %60 {strides = array<i32>} : memref<8x50xf32, #tpu.memory_space<vmem>>, vector<8x50xf32>,
    %c0_37 = arith.constant 0 : index
    %c0_38 = arith.constant 0 : index
    %62 = vector.load %arg14[%c0_37, %c0_38] : memref<8x1xf32, #tpu.memory_space<vmem>>, vector<8x1xf32>
    tpu.vector_store %arg14[%c0_37, %c0_38], %57 {strides = array<i32>} : memref<8x1xf32, #tpu.memory_space<vmem>>, vector<8x1xf32>,
    return
  }
  func.func @transform_0(%arg0: i32) -> (i32, i32) {
    %c0_i32 = arith.constant 0 : i32
    %c0_i32_0 = arith.constant 0 : i32
    return %arg0, %c0_i32 : i32, i32
  }
  func.func @transform_1(%arg0: i32) -> (i32, i32) {
    %c0_i32 = arith.constant 0 : i32
    %c0_i32_0 = arith.constant 0 : i32
    return %arg0, %c0_i32 : i32, i32
  }
  func.func @transform_2(%arg0: i32) -> (i32, i32) {
    %c0_i32 = arith.constant 0 : i32
    %c0_i32_0 = arith.constant 0 : i32
    %c0_i32_1 = arith.constant 0 : i32
    return %c0_i32, %c0_i32_0 : i32, i32
  }
  func.func @transform_3(%arg0: i32) -> (i32, i32) {
    %c0_i32 = arith.constant 0 : i32
    %c0_i32_0 = arith.constant 0 : i32
    %c0_i32_1 = arith.constant 0 : i32
    return %c0_i32, %c0_i32_0 : i32, i32
  }
  func.func @transform_4(%arg0: i32) -> (i32, i32) {
    %c0_i32 = arith.constant 0 : i32
    %c0_i32_0 = arith.constant 0 : i32
    %c0_i32_1 = arith.constant 0 : i32
    return %c0_i32, %c0_i32_0 : i32, i32
  }
  func.func @transform_5(%arg0: i32) -> (i32, i32) {
    %c0_i32 = arith.constant 0 : i32
    %c0_i32_0 = arith.constant 0 : i32
    %c0_i32_1 = arith.constant 0 : i32
    return %c0_i32, %c0_i32_0 : i32, i32
  }
  func.func @transform_6(%arg0: i32) -> (i32, i32) {
    %c0_i32 = arith.constant 0 : i32
    %c0_i32_0 = arith.constant 0 : i32
    %c0_i32_1 = arith.constant 0 : i32
    return %c0_i32, %c0_i32_0 : i32, i32
  }
  func.func @transform_7(%arg0: i32) -> (i32, i32) {
    %c0_i32 = arith.constant 0 : i32
    %c0_i32_0 = arith.constant 0 : i32
    %c0_i32_1 = arith.constant 0 : i32
    return %c0_i32, %c0_i32_0 : i32, i32
  }
  func.func @transform_8(%arg0: i32) -> (i32, i32) {
    %c0_i32 = arith.constant 0 : i32
    %c0_i32_0 = arith.constant 0 : i32
    %c0_i32_1 = arith.constant 0 : i32
    return %c0_i32, %c0_i32_0 : i32, i32
  }
  func.func @transform_9(%arg0: i32) -> (i32, i32) {
    %c0_i32 = arith.constant 0 : i32
    %c0_i32_0 = arith.constant 0 : i32
    %c0_i32_1 = arith.constant 0 : i32
    return %c0_i32, %c0_i32_0 : i32, i32
  }
  func.func @transform_10(%arg0: i32) -> (i32, i32) {
    %c0_i32 = arith.constant 0 : i32
    %c0_i32_0 = arith.constant 0 : i32
    %c0_i32_1 = arith.constant 0 : i32
    return %c0_i32, %c0_i32_0 : i32, i32
  }
  func.func @transform_11(%arg0: i32) -> (i32, i32) {
    %c0_i32 = arith.constant 0 : i32
    %c0_i32_0 = arith.constant 0 : i32
    return %arg0, %c0_i32 : i32, i32
  }
  func.func @transform_12(%arg0: i32) -> (i32, i32) {
    %c0_i32 = arith.constant 0 : i32
    %c0_i32_0 = arith.constant 0 : i32
    return %arg0, %c0_i32 : i32, i32
  }
  func.func @transform_13(%arg0: i32) -> (i32, i32) {
    %c0_i32 = arith.constant 0 : i32
    %c0_i32_0 = arith.constant 0 : i32
    return %arg0, %c0_i32 : i32, i32
  }
}

</mosaic_0001>

<llo_original>
// kernel: squeeze.1
$region0: #{squeeze.1}
  %s0 = inlined_call_operand.vmem [shape: f32[16], index: 0, kind: input, shape index: {}]
  %s1 = inlined_call_operand.hbm [shape: f32[2,8], index: 1, kind: output, shape index: {}]
  $region1: #{squeeze.1} parent=0
    #allocation0 [shape = 'u8[1024]{0}', space=vmem, size = 0x400, scoped, tag = 'operand span for operand 1']
    #allocation1 [shape = 's32[1]{0}', space=sflag, size = 0x4, scoped, tag = 'scoped memory for squeeze.1']
    #allocation2 [shape = 'u8[4096]{0}', space=vmem, size = 0x1000, scoped, tag = 'scoped mem for output reshape']
    #allocation3 [shape = 'u8[4096]{0}', space=vmem, size = 0x1000, scoped, tag = 'scoped mem for input reshape']
    %2 = vsyncpa [#allocation1], 0
    %s4 = sshll.u32 1, 1
    %s5 = ssub.s32 %s4, 1
    %v6 = vld [vmem:[%s0] sm:%s5]
    %7 = vst [vmem:[#allocation3] sm:%s5] %v6
    %v8 = vld [vmem:[#allocation3] sm:$0x1]
    %vm9 = vcmask 64512
    %10 = vst.msk [vmem:[#allocation2] sm:$0x1] %vm9, %v8
    %v11 = vld [vmem:[#allocation3] sm:$0x1]
    %12 = vrot.lane.b32.xlu0 %v11, 120
    %v13 = vpop.permute.xlu0 %12
    %vm14 = vcmask 64512
    %s15 = scalar_lea.vmem [#allocation2], 1
    %16 = vst.msk [vmem:[%s15] sm:$0x1] %vm14, %v13
    %s18 = sshll.u32 1, 2
    %s19 = ssub.s32 %s18, 1
    %v21 = vld [vmem:[#allocation2] sm:%s19]
    %s22 = sshll.u32 1, 2
    %s23 = ssub.s32 %s22, 1
    %24 = vst [vmem:[#allocation0] sm:%s23] %v21
    %s26 = ssub.s32 32, 32
    %27 = vsyncadd [#allocation1], %s26
    %s29 = sshll.u32 [#allocation0], 4
    %s30 = int_to_ptr.vmem [resolvable:$true] %s29
    %32 = dma.vmem_to_hbm [thread:$0]  %s30, 32, %s1, [#allocation1]
    %33 = dma.done [#allocation1], 32
    %34 = vsyncpa [#allocation1], 1

// kernel: plddt_forward.1
$region0: #{plddt_forward.1}
  #allocation0 [shape = 'u32[]', space=smem, size = 0x4, offset = 0x4, fixed_abs, tag = 'smem constant byte address 0x4 - core index']
  #allocation1 [shape = 'u32[144,128]{1,0:T(1,128)}', space=vmem, size = 0x12000, scoped, tag = 'internal scratch']
  %s0 = inlined_call_operand.hbm [shape: f32[16,32], index: 0, kind: input, shape index: {}]
  %s1 = inlined_call_operand.vmem [shape: f32[16,1], index: 1, kind: input, shape index: {}]
  %s2 = inlined_call_operand.vmem [shape: f32[1,32], index: 2, kind: input, shape index: {}]
  %s3 = inlined_call_operand.vmem [shape: f32[1,32], index: 3, kind: input, shape index: {}]
  %s4 = inlined_call_operand.vmem [shape: f32[32,32], index: 4, kind: input, shape index: {}]
  %s5 = inlined_call_operand.vmem [shape: f32[1,32], index: 5, kind: input, shape index: {}]
  %s6 = inlined_call_operand.hbm [shape: f32[32,32], index: 6, kind: input, shape index: {}]
  %s7 = inlined_call_operand.vmem [shape: f32[1,32], index: 7, kind: input, shape index: {}]
  %s8 = inlined_call_operand.hbm [shape: f32[32,50], index: 8, kind: input, shape index: {}]
  %s9 = inlined_call_operand.vmem [shape: f32[1,50], index: 9, kind: input, shape index: {}]
  %s10 = inlined_call_operand.vmem [shape: f32[1,50], index: 10, kind: input, shape index: {}]
  %s11 = inlined_call_operand.hbm [shape: f32[16,50], index: 11, kind: output, shape index: {0}]
  %s12 = inlined_call_operand.hbm [shape: f32[16,50], index: 12, kind: output, shape index: {1}]
  %s13 = inlined_call_operand.vmem [shape: f32[16,1], index: 13, kind: output, shape index: {2}]
  %14 = xla_tuple %s11, %s12, %s13
  %s15 = sld [smem:[#allocation0]]
  $region105: #{plddt_forward.1} parent=0
    _
  %s17 = ssub.s32 1, %s15
  %s18 = scalar_select 0, %s17, %s15
  $region1: #{plddt_forward.1} parent=0
    #allocation2 [shape = 'u8[8192]{0}', space=vmem, size = 0x2000, scoped, tag = 'input window, operand 0']
    #allocation3 [shape = 's32[2]{0}', space=sflag, size = 0x8, scoped, tag = 'scoped memory for plddt_forward.1']
    #allocation4 [shape = 's32[2]{0}', space=sflag, size = 0x8, scoped, tag = 'scoped memory for plddt_forward.1']
    #allocation5 [shape = 'u8[16384]{0}', space=vmem, size = 0x4000, scoped, tag = 'input window, operand 6, single buffered']
    #allocation6 [shape = 's32[1]{0}', space=sflag, size = 0x4, scoped, tag = 'scoped memory for plddt_forward.1']
    #allocation7 [shape = 'u8[16384]{0}', space=vmem, size = 0x4000, scoped, tag = 'input window, operand 8, single buffered']
    #allocation8 [shape = 'u8[8192]{0}', space=vmem, size = 0x2000, scoped, tag = 'output window, operand 0']
    #allocation9 [shape = 'u8[8192]{0}', space=vmem, size = 0x2000, scoped, tag = 'output window, operand 1']
    #allocation10 [shape = 's32[2]{0}', space=sflag, size = 0x8, scoped, tag = 'scoped memory for plddt_forward.1']
    %19 = vsyncpa [#allocation3], 0
    %s20 = scalar_lea.sflag [#allocation3], 1
    %21 = vsyncpa %s20, 0
    %22 = vsyncpa [#allocation6], 0
    %23 = vsyncpa [#allocation4], 0
    %s24 = scalar_lea.sflag [#allocation4], 1
    %25 = vsyncpa %s24, 0
    %26 = vsyncpa [#allocation10], 0
    %s27 = scalar_lea.sflag [#allocation10], 1
    %28 = vsyncpa %s27, 0
    loop: start=0, step=1, limit=4
    $region2: #{plddt_forward.1} parent=1 // loop_pre_header
      _
    $region3: #{plddt_forward.1} parent=1 // loop_header
      %s30 = sphi 0, %s34
      %p31 = scmp.ge.s32.totalorder %s30, 4
      %s40 = sphi 0, %s42
      %s43 = sphi 0, %s40
      %s44 = sphi 0, %s43
      %s60 = sphi 0, %s44
      %s66 = sphi 0, %s68
      %s69 = sphi 0, %s66
      %s70 = sphi 0, %s69
      %s86 = sphi 0, %s70
      %s90 = sphi 0, %s90
      %s92 = sphi 0, %s90
      %s93 = sphi 0, %s92
      %s107 = sphi 0, %s93
      %s111 = sphi 0, %s111
      %s113 = sphi 0, %s111
      %s114 = sphi 0, %s113
      %s128 = sphi 0, %s114
      %s132 = sphi 0, %s132
      %s134 = sphi 0, %s132
      %s135 = sphi 0, %s134
      %s149 = sphi 0, %s135
      %s153 = sphi 0, %s153
      %s155 = sphi 0, %s153
      %s156 = sphi 0, %s155
      %s170 = sphi 0, %s156
      %s174 = sphi 0, %s174
      %s176 = sphi 0, %s174
      %s177 = sphi 0, %s176
      %s191 = sphi 0, %s177
      %s195 = sphi 0, %s195
      %s197 = sphi 0, %s195
      %s198 = sphi 0, %s197
      %s212 = sphi 0, %s198
      %s216 = sphi 0, %s216
      %s218 = sphi 0, %s216
      %s219 = sphi 0, %s218
      %s233 = sphi 0, %s219
      %s237 = sphi 0, %s237
      %s239 = sphi 0, %s237
      %s240 = sphi 0, %s239
      %s254 = sphi 0, %s240
      %s258 = sphi 0, %s258
      %s260 = sphi 0, %s258
      %s261 = sphi 0, %s260
      %s275 = sphi 0, %s261
      %s281 = sphi 0, %s283
      %s284 = sphi 0, %s281
      %s285 = sphi 0, %s284
      %s301 = sphi 0, %s285
      %s307 = sphi 0, %s309
      %s310 = sphi 0, %s307
      %s311 = sphi 0, %s310
      %s327 = sphi 0, %s311
      %s333 = sphi 0, %s335
      %s336 = sphi 0, %s333
      %s337 = sphi 0, %s336
      %s353 = sphi 0, %s337
    $region4: #{plddt_forward.1} parent=1 // loop_header_branch
      %33 = sbr.rel (%p31) target = $region8
    $region5: #{plddt_forward.1} parent=1 // loop_body
      %s35 = ssub.s32 %s30, 1
      %s36 = ssub.s32 %s30, 2
      %s37 = sadd.s32 %s30, 1
      %s38 = ssub.s32 %s30, %s37
      %p39 = scmp.eq.s32.totalorder %s38, 0
      %s41 = sadd.s32 %s40, 1
      %s42 = scalar_select %p39, %s40, %s41
      %p45 = pneg %p39
      %p46 = scmp.eq.s32.totalorder %s30, 1
      %p47 = por %p45, %p46
      %p48 = scmp.ne.s32.totalorder %s40, %s43
      %p49 = scmp.eq.s32.totalorder %s30, 0
      %p50 = por %p48, %p49
      %p51 = scmp.ne.s32.totalorder %s40, %s43
      %p52 = scmp.eq.s32.totalorder %s35, 1
      %p53 = por %p51, %p52
      %p54 = scmp.ne.s32.totalorder %s43, %s44
      %p55 = scmp.eq.s32.totalorder %s35, 0
      %p56 = por %p54, %p55
      %p57 = scmp.ne.s32.totalorder %s43, %s44
      %p58 = scmp.eq.s32.totalorder %s36, 1
      %p59 = por %p57, %p58
      %p61 = scmp.ne.s32.totalorder %s44, %s60
      %p62 = scmp.eq.s32.totalorder %s36, 0
      %p63 = por %p61, %p62
      %s64 = ssub.s32 %s30, %s37
      %p65 = scmp.eq.s32.totalorder %s64, 0
      %s67 = sadd.s32 %s66, 1
      %s68 = scalar_select %p65, %s66, %s67
      %p71 = pneg %p65
      %p72 = scmp.eq.s32.totalorder %s30, 1
      %p73 = por %p71, %p72
      %p74 = scmp.ne.s32.totalorder %s66, %s69
      %p75 = scmp.eq.s32.totalorder %s30, 0
      %p76 = por %p74, %p75
      %p77 = scmp.ne.s32.totalorder %s66, %s69
      %p78 = scmp.eq.s32.totalorder %s35, 1
      %p79 = por %p77, %p78
      %p80 = scmp.ne.s32.totalorder %s69, %s70
      %p81 = scmp.eq.s32.totalorder %s35, 0
      %p82 = por %p80, %p81
      %p83 = scmp.ne.s32.totalorder %s69, %s70
      %p84 = scmp.eq.s32.totalorder %s36, 1
      %p85 = por %p83, %p84
      %p87 = scmp.ne.s32.totalorder %s70, %s86
      %p88 = scmp.eq.s32.totalorder %s36, 0
      %p89 = por %p87, %p88
      %s91 = sadd.s32 %s90, 1
      %p94 = scmp.eq.s32.totalorder %s30, 1
      %p95 = scmp.ne.s32.totalorder %s90, %s92
      %p96 = scmp.eq.s32.totalorder %s30, 0
      %p97 = por %p95, %p96
      %p98 = scmp.ne.s32.totalorder %s90, %s92
      %p99 = scmp.eq.s32.totalorder %s35, 1
      %p100 = por %p98, %p99
      %p101 = scmp.ne.s32.totalorder %s92, %s93
      %p102 = scmp.eq.s32.totalorder %s35, 0
      %p103 = por %p101, %p102
      %p104 = scmp.ne.s32.totalorder %s92, %s93
      %p105 = scmp.eq.s32.totalorder %s36, 1
      %p106 = por %p104, %p105
      %p108 = scmp.ne.s32.totalorder %s93, %s107
      %p109 = scmp.eq.s32.totalorder %s36, 0
      %p110 = por %p108, %p109
      %s112 = sadd.s32 %s111, 1
      %p115 = scmp.eq.s32.totalorder %s30, 1
      %p116 = scmp.ne.s32.totalorder %s111, %s113
      %p117 = scmp.eq.s32.totalorder %s30, 0
      %p118 = por %p116, %p117
      %p119 = scmp.ne.s32.totalorder %s111, %s113
      %p120 = scmp.eq.s32.totalorder %s35, 1
      %p121 = por %p119, %p120
      %p122 = scmp.ne.s32.totalorder %s113, %s114
      %p123 = scmp.eq.s32.totalorder %s35, 0
      %p124 = por %p122, %p123
      %p125 = scmp.ne.s32.totalorder %s113, %s114
      %p126 = scmp.eq.s32.totalorder %s36, 1
      %p127 = por %p125, %p126
      %p129 = scmp.ne.s32.totalorder %s114, %s128
      %p130 = scmp.eq.s32.totalorder %s36, 0
      %p131 = por %p129, %p130
      %s133 = sadd.s32 %s132, 1
      %p136 = scmp.eq.s32.totalorder %s30, 1
      %p137 = scmp.ne.s32.totalorder %s132, %s134
      %p138 = scmp.eq.s32.totalorder %s30, 0
      %p139 = por %p137, %p138
      %p140 = scmp.ne.s32.totalorder %s132, %s134
      %p141 = scmp.eq.s32.totalorder %s35, 1
      %p142 = por %p140, %p141
      %p143 = scmp.ne.s32.totalorder %s134, %s135
      %p144 = scmp.eq.s32.totalorder %s35, 0
      %p145 = por %p143, %p144
      %p146 = scmp.ne.s32.totalorder %s134, %s135
      %p147 = scmp.eq.s32.totalorder %s36, 1
      %p148 = por %p146, %p147
      %p150 = scmp.ne.s32.totalorder %s135, %s149
      %p151 = scmp.eq.s32.totalorder %s36, 0
      %p152 = por %p150, %p151
      %s154 = sadd.s32 %s153, 1
      %p157 = scmp.eq.s32.totalorder %s30, 1
      %p158 = scmp.ne.s32.totalorder %s153, %s155
      %p159 = scmp.eq.s32.totalorder %s30, 0
      %p160 = por %p158, %p159
      %p161 = scmp.ne.s32.totalorder %s153, %s155
      %p162 = scmp.eq.s32.totalorder %s35, 1
      %p163 = por %p161, %p162
      %p164 = scmp.ne.s32.totalorder %s155, %s156
      %p165 = scmp.eq.s32.totalorder %s35, 0
      %p166 = por %p164, %p165
      %p167 = scmp.ne.s32.totalorder %s155, %s156
      %p168 = scmp.eq.s32.totalorder %s36, 1
      %p169 = por %p167, %p168
      %p171 = scmp.ne.s32.totalorder %s156, %s170
      %p172 = scmp.eq.s32.totalorder %s36, 0
      %p173 = por %p171, %p172
      %s175 = sadd.s32 %s174, 1
      %p178 = scmp.eq.s32.totalorder %s30, 1
      %p179 = scmp.ne.s32.totalorder %s174, %s176
      %p180 = scmp.eq.s32.totalorder %s30, 0
      %p181 = por %p179, %p180
      %p182 = scmp.ne.s32.totalorder %s174, %s176
      %p183 = scmp.eq.s32.totalorder %s35, 1
      %p184 = por %p182, %p183
      %p185 = scmp.ne.s32.totalorder %s176, %s177
      %p186 = scmp.eq.s32.totalorder %s35, 0
      %p187 = por %p185, %p186
      %p188 = scmp.ne.s32.totalorder %s176, %s177
      %p189 = scmp.eq.s32.totalorder %s36, 1
      %p190 = por %p188, %p189
      %p192 = scmp.ne.s32.totalorder %s177, %s191
      %p193 = scmp.eq.s32.totalorder %s36, 0
      %p194 = por %p192, %p193
      %s196 = sadd.s32 %s195, 1
      %p199 = scmp.eq.s32.totalorder %s30, 1
      %p200 = scmp.ne.s32.totalorder %s195, %s197
      %p201 = scmp.eq.s32.totalorder %s30, 0
      %p202 = por %p200, %p201
      %p203 = scmp.ne.s32.totalorder %s195, %s197
      %p204 = scmp.eq.s32.totalorder %s35, 1
      %p205 = por %p203, %p204
      %p206 = scmp.ne.s32.totalorder %s197, %s198
      %p207 = scmp.eq.s32.totalorder %s35, 0
      %p208 = por %p206, %p207
      %p209 = scmp.ne.s32.totalorder %s197, %s198
      %p210 = scmp.eq.s32.totalorder %s36, 1
      %p211 = por %p209, %p210
      %p213 = scmp.ne.s32.totalorder %s198, %s212
      %p214 = scmp.eq.s32.totalorder %s36, 0
      %p215 = por %p213, %p214
      %s217 = sadd.s32 %s216, 1
      %p220 = scmp.eq.s32.totalorder %s30, 1
      %p221 = scmp.ne.s32.totalorder %s216, %s218
      %p222 = scmp.eq.s32.totalorder %s30, 0
      %p223 = por %p221, %p222
      %p224 = scmp.ne.s32.totalorder %s216, %s218
      %p225 = scmp.eq.s32.totalorder %s35, 1
      %p226 = por %p224, %p225
      %p227 = scmp.ne.s32.totalorder %s218, %s219
      %p228 = scmp.eq.s32.totalorder %s35, 0
      %p229 = por %p227, %p228
      %p230 = scmp.ne.s32.totalorder %s218, %s219
      %p231 = scmp.eq.s32.totalorder %s36, 1
      %p232 = por %p230, %p231
      %p234 = scmp.ne.s32.totalorder %s219, %s233
      %p235 = scmp.eq.s32.totalorder %s36, 0
      %p236 = por %p234, %p235
      %s238 = sadd.s32 %s237, 1
      %p241 = scmp.eq.s32.totalorder %s30, 1
      %p242 = scmp.ne.s32.totalorder %s237, %s239
      %p243 = scmp.eq.s32.totalorder %s30, 0
      %p244 = por %p242, %p243
      %p245 = scmp.ne.s32.totalorder %s237, %s239
      %p246 = scmp.eq.s32.totalorder %s35, 1
      %p247 = por %p245, %p246
      %p248 = scmp.ne.s32.totalorder %s239, %s240
      %p249 = scmp.eq.s32.totalorder %s35, 0
      %p250 = por %p248, %p249
      %p251 = scmp.ne.s32.totalorder %s239, %s240
      %p252 = scmp.eq.s32.totalorder %s36, 1
      %p253 = por %p251, %p252
      %p255 = scmp.ne.s32.totalorder %s240, %s254
      %p256 = scmp.eq.s32.totalorder %s36, 0
      %p257 = por %p255, %p256
      %s259 = sadd.s32 %s258, 1
      %p262 = scmp.eq.s32.totalorder %s30, 1
      %p263 = scmp.ne.s32.totalorder %s258, %s260
      %p264 = scmp.eq.s32.totalorder %s30, 0
      %p265 = por %p263, %p264
      %p266 = scmp.ne.s32.totalorder %s258, %s260
      %p267 = scmp.eq.s32.totalorder %s35, 1
      %p268 = por %p266, %p267
      %p269 = scmp.ne.s32.totalorder %s260, %s261
      %p270 = scmp.eq.s32.totalorder %s35, 0
      %p271 = por %p269, %p270
      %p272 = scmp.ne.s32.totalorder %s260, %s261
      %p273 = scmp.eq.s32.totalorder %s36, 1
      %p274 = por %p272, %p273
      %p276 = scmp.ne.s32.totalorder %s261, %s275
      %p277 = scmp.eq.s32.totalorder %s36, 0
      %p278 = por %p276, %p277
      %s279 = ssub.s32 %s30, %s37
      %p280 = scmp.eq.s32.totalorder %s279, 0
      %s282 = sadd.s32 %s281, 1
      %s283 = scalar_select %p280, %s281, %s282
      %p286 = pneg %p280
      %p287 = scmp.eq.s32.totalorder %s30, 1
      %p288 = por %p286, %p287
      %p289 = scmp.ne.s32.totalorder %s281, %s284
      %p290 = scmp.eq.s32.totalorder %s30, 0
      %p291 = por %p289, %p290
      %p292 = scmp.ne.s32.totalorder %s281, %s284
      %p293 = scmp.eq.s32.totalorder %s35, 1
      %p294 = por %p292, %p293
      %p295 = scmp.ne.s32.totalorder %s284, %s285
      %p296 = scmp.eq.s32.totalorder %s35, 0
      %p297 = por %p295, %p296
      %p298 = scmp.ne.s32.totalorder %s284, %s285
      %p299 = scmp.eq.s32.totalorder %s36, 1
      %p300 = por %p298, %p299
      %p302 = scmp.ne.s32.totalorder %s285, %s301
      %p303 = scmp.eq.s32.totalorder %s36, 0
      %p304 = por %p302, %p303
      %s305 = ssub.s32 %s30, %s37
      %p306 = scmp.eq.s32.totalorder %s305, 0
      %s308 = sadd.s32 %s307, 1
      %s309 = scalar_select %p306, %s307, %s308
      %p312 = pneg %p306
      %p313 = scmp.eq.s32.totalorder %s30, 1
      %p314 = por %p312, %p313
      %p315 = scmp.ne.s32.totalorder %s307, %s310
      %p316 = scmp.eq.s32.totalorder %s30, 0
      %p317 = por %p315, %p316
      %p318 = scmp.ne.s32.totalorder %s307, %s310
      %p319 = scmp.eq.s32.totalorder %s35, 1
      %p320 = por %p318, %p319
      %p321 = scmp.ne.s32.totalorder %s310, %s311
      %p322 = scmp.eq.s32.totalorder %s35, 0
      %p323 = por %p321, %p322
      %p324 = scmp.ne.s32.totalorder %s310, %s311
      %p325 = scmp.eq.s32.totalorder %s36, 1
      %p326 = por %p324, %p325
      %p328 = scmp.ne.s32.totalorder %s311, %s327
      %p329 = scmp.eq.s32.totalorder %s36, 0
      %p330 = por %p328, %p329
      %s331 = ssub.s32 %s30, %s37
      %p332 = scmp.eq.s32.totalorder %s331, 0
      %s334 = sadd.s32 %s333, 1
      %s335 = scalar_select %p332, %s333, %s334
      %p338 = pneg %p332
      %p339 = scmp.eq.s32.totalorder %s30, 1
      %p340 = por %p338, %p339
      %p341 = scmp.ne.s32.totalorder %s333, %s336
      %p342 = scmp.eq.s32.totalorder %s30, 0
      %p343 = por %p341, %p342
      %p344 = scmp.ne.s32.totalorder %s333, %s336
      %p345 = scmp.eq.s32.totalorder %s35, 1
      %p346 = por %p344, %p345
      %p347 = scmp.ne.s32.totalorder %s336, %s337
      %p348 = scmp.eq.s32.totalorder %s35, 0
      %p349 = por %p347, %p348
      %p350 = scmp.ne.s32.totalorder %s336, %s337
      %p351 = scmp.eq.s32.totalorder %s36, 1
      %p352 = por %p350, %p351
      %p354 = scmp.ne.s32.totalorder %s337, %s353
      %p355 = scmp.eq.s32.totalorder %s36, 0
      %p356 = por %p354, %p355
      %p357 = scmp.le.s32.totalorder 1, %s30
      %p358 = scmp.lt.s32.totalorder %s30, 3
      %p359 = pnand %p357, %p358
      %p360 = pneg %p359
      // Predicated region
      $region9: #{plddt_forward.1} parent=5 // pred_check
        _
      $region10: #{plddt_forward.1} parent=5 // pred_check_branch
        %362 = sbr.rel (%p359) target = $region12
      $region11: #{plddt_forward.1} parent=5 // pred_region
        %s363 = ssub.s32 %s30, 1
        // Predicated region
        $region13: #{plddt_forward.1} parent=11 // pred_check
          %p364 = pneg %p103
        $region14: #{plddt_forward.1} parent=11 // pred_check_branch
          %366 = sbr.rel (%p364) target = $region16
        $region15: #{plddt_forward.1} parent=11 // pred_region
          _
        $region16: #{plddt_forward.1} parent=11 // pred_fallthru
          _
        // Predicated region
        $region17: #{plddt_forward.1} parent=11 // pred_check
          %p367 = pneg %p124
        $region18: #{plddt_forward.1} parent=11 // pred_check_branch
          %369 = sbr.rel (%p367) target = $region20
        $region19: #{plddt_forward.1} parent=11 // pred_region
          _
        $region20: #{plddt_forward.1} parent=11 // pred_fallthru
          _
        // Predicated region
        $region21: #{plddt_forward.1} parent=11 // pred_check
          %p370 = pneg %p145
        $region22: #{plddt_forward.1} parent=11 // pred_check_branch
          %372 = sbr.rel (%p370) target = $region24
        $region23: #{plddt_forward.1} parent=11 // pred_region
          _
        $region24: #{plddt_forward.1} parent=11 // pred_fallthru
          _
        // Predicated region
        $region25: #{plddt_forward.1} parent=11 // pred_check
          %p373 = pneg %p166
        $region26: #{plddt_forward.1} parent=11 // pred_check_branch
          %375 = sbr.rel (%p373) target = $region28
        $region27: #{plddt_forward.1} parent=11 // pred_region
          _
        $region28: #{plddt_forward.1} parent=11 // pred_fallthru
          _
        // Predicated region
        $region29: #{plddt_forward.1} parent=11 // pred_check
          %p376 = pneg %p187
        $region30: #{plddt_forward.1} parent=11 // pred_check_branch
          %378 = sbr.rel (%p376) target = $region32
        $region31: #{plddt_forward.1} parent=11 // pred_region
          %s380 = ssub.s32 512, 512
          %381 = vsyncadd [#allocation6], %s380
          %s382 = sshll.u32 [#allocation5], 4
          %s383 = int_to_ptr.vmem [resolvable:$true] %s382
          %388 = dma.hbm_to_vmem [thread:$0]  %s6, 512, %s383, [#allocation6], 128, 128, 8
        $region32: #{plddt_forward.1} parent=11 // pred_fallthru
          _
        // Predicated region
        $region33: #{plddt_forward.1} parent=11 // pred_check
          %p389 = pneg %p208
        $region34: #{plddt_forward.1} parent=11 // pred_check_branch
          %391 = sbr.rel (%p389) target = $region36
        $region35: #{plddt_forward.1} parent=11 // pred_region
          _
        $region36: #{plddt_forward.1} parent=11 // pred_fallthru
          _
        // Predicated region
        $region37: #{plddt_forward.1} parent=11 // pred_check
          %p392 = pneg %p229
        $region38: #{plddt_forward.1} parent=11 // pred_check_branch
          %394 = sbr.rel (%p392) target = $region40
        $region39: #{plddt_forward.1} parent=11 // pred_region
          %s396 = ssub.s32 512, 512
          %397 = vsyncadd [#allocation6], %s396
          %s398 = sshll.u32 [#allocation7], 4
          %s399 = int_to_ptr.vmem [resolvable:$true] %s398
          %404 = dma.hbm_to_vmem [thread:$0]  %s8, 512, %s399, [#allocation6], 128, 128, 8
        $region40: #{plddt_forward.1} parent=11 // pred_fallthru
          _
        // Predicated region
        $region41: #{plddt_forward.1} parent=11 // pred_check
          %p405 = pneg %p250
        $region42: #{plddt_forward.1} parent=11 // pred_check_branch
          %407 = sbr.rel (%p405) target = $region44
        $region43: #{plddt_forward.1} parent=11 // pred_region
          _
        $region44: #{plddt_forward.1} parent=11 // pred_fallthru
          _
        // Predicated region
        $region45: #{plddt_forward.1} parent=11 // pred_check
          %p408 = pneg %p271
        $region46: #{plddt_forward.1} parent=11 // pred_check_branch
          %410 = sbr.rel (%p408) target = $region48
        $region47: #{plddt_forward.1} parent=11 // pred_region
          _
        $region48: #{plddt_forward.1} parent=11 // pred_fallthru
          _
      $region12: #{plddt_forward.1} parent=5 // pred_fallthru
        _
      %p411 = scmp.lt.s32.totalorder %s30, 2
      // Predicated region
      $region49: #{plddt_forward.1} parent=5 // pred_check
        %p412 = pneg %p411
      $region50: #{plddt_forward.1} parent=5 // pred_check_branch
        %414 = sbr.rel (%p412) target = $region52
      $region51: #{plddt_forward.1} parent=5 // pred_region
        // Predicated region
        $region53: #{plddt_forward.1} parent=51 // pred_check
          %p415 = pneg %p50
        $region54: #{plddt_forward.1} parent=51 // pred_check_branch
          %417 = sbr.rel (%p415) target = $region56
        $region55: #{plddt_forward.1} parent=51 // pred_region
          %s418 = sand.u32 %s40, 1
          %s419 = scalar_lea.sflag [#allocation3], %s418
          %s420 = sand.u32 %s40, 1
          %s421 = smul.addr %s420, 8
          %s422 = scalar_lea.vmem [#allocation2], %s421
          %s424 = ssub.s32 128, 128
          %425 = vsyncadd %s419, %s424
          %s426 = smul.addr %s30, 128
          %s427 = scalar_lea.hbm %s0, %s426
          %s429 = sshll.u32 %s422, 4
          %s430 = int_to_ptr.vmem [resolvable:$true] %s429
          %432 = dma.hbm_to_vmem [thread:$0]  %s427, 128, %s430, %s419
        $region56: #{plddt_forward.1} parent=51 // pred_fallthru
          _
        // Predicated region
        $region57: #{plddt_forward.1} parent=51 // pred_check
          %p433 = pneg %p76
        $region58: #{plddt_forward.1} parent=51 // pred_check_branch
          %435 = sbr.rel (%p433) target = $region60
        $region59: #{plddt_forward.1} parent=51 // pred_region
          %p436 = scmp.lt.s32.totalorder %s30, 1
          %s437 = scalar_select %p436, %s30, 1
          %s438 = smul.addr %s437, 8
          %s439 = scalar_lea.vmem %s1, %s438
        $region60: #{plddt_forward.1} parent=51 // pred_fallthru
          _
      $region52: #{plddt_forward.1} parent=5 // pred_fallthru
        _
      %p440 = scmp.le.s32.totalorder 1, %s30
      %p441 = scmp.lt.s32.totalorder %s30, 3
      %p442 = pnand %p440, %p441
      %p443 = pneg %p442
      // Predicated region
      $region61: #{plddt_forward.1} parent=5 // pred_check
        _
      $region62: #{plddt_forward.1} parent=5 // pred_check_branch
        %445 = sbr.rel (%p442) target = $region64
      $region63: #{plddt_forward.1} parent=5 // pred_region
        %s446 = ssub.s32 %s30, 1
        %s447 = sand.u32 %s43, 1
        %s448 = scalar_lea.sflag [#allocation3], %s447
        %s449 = sand.u32 %s43, 1
        %s450 = smul.addr %s449, 8
        %s451 = scalar_lea.vmem [#allocation2], %s450
        // Predicated region
        $region65: #{plddt_forward.1} parent=63 // pred_check
          %p452 = pneg %p56
        $region66: #{plddt_forward.1} parent=63 // pred_check_branch
          %454 = sbr.rel (%p452) target = $region68
        $region67: #{plddt_forward.1} parent=63 // pred_region
          %455 = dma.done %s448, 128
        $region68: #{plddt_forward.1} parent=63 // pred_fallthru
          _
        // Predicated region
        $region69: #{plddt_forward.1} parent=63 // pred_check
          %p456 = pneg %p187
        $region70: #{plddt_forward.1} parent=63 // pred_check_branch
          %458 = sbr.rel (%p456) target = $region72
        $region71: #{plddt_forward.1} parent=63 // pred_region
          %459 = dma.done [#allocation6], 512
        $region72: #{plddt_forward.1} parent=63 // pred_fallthru
          _
        // Predicated region
        $region73: #{plddt_forward.1} parent=63 // pred_check
          %p460 = pneg %p229
        $region74: #{plddt_forward.1} parent=63 // pred_check_branch
          %462 = sbr.rel (%p460) target = $region76
        $region75: #{plddt_forward.1} parent=63 // pred_region
          %463 = dma.done [#allocation6], 512
        $region76: #{plddt_forward.1} parent=63 // pred_fallthru
          _
        %s464 = sand.u32 %s43, 1
        %s465 = scalar_lea.sflag [#allocation3], %s464
        %s466 = sand.u32 %s43, 1
        %s467 = smul.addr %s466, 8
        %s468 = scalar_lea.vmem [#allocation2], %s467
        %p469 = pneg %p56
        %p470 = pneg %p53
        %p471 = scmp.lt.s32.totalorder %s35, 1
        %s472 = scalar_select %p471, %s35, 1
        %s473 = smul.addr %s472, 8
        %s474 = scalar_lea.vmem %s1, %s473
        %p475 = pneg %p82
        %p476 = pneg %p79
        %p477 = pneg %p103
        %p478 = pneg %p100
        %p479 = pneg %p124
        %p480 = pneg %p121
        %p481 = pneg %p145
        %p482 = pneg %p142
        %p483 = pneg %p166
        %p484 = pneg %p163
        %p485 = pneg %p187
        %p486 = pneg %p184
        %p487 = pneg %p208
        %p488 = pneg %p205
        %p489 = pneg %p229
        %p490 = pneg %p226
        %p491 = pneg %p250
        %p492 = pneg %p247
        %p493 = pneg %p271
        %p494 = pneg %p268
        %p495 = pneg %p297
        %p496 = pneg %p294
        %s497 = sand.u32 %s284, 1
        %s498 = scalar_lea.sflag [#allocation4], %s497
        %s499 = sand.u32 %s284, 1
        %s500 = smul.addr %s499, 8
        %s501 = scalar_lea.vmem [#allocation8], %s500
        %p502 = pneg %p323
        %p503 = pneg %p320
        %s504 = sand.u32 %s310, 1
        %s505 = scalar_lea.sflag [#allocation10], %s504
        %s506 = sand.u32 %s310, 1
        %s507 = smul.addr %s506, 8
        %s508 = scalar_lea.vmem [#allocation9], %s507
        %p509 = pneg %p349
        %p510 = pneg %p346
        %p511 = scmp.lt.s32.totalorder %s35, 1
        %s512 = scalar_select %p511, %s35, 1
        %s513 = smul.addr %s512, 8
        %s514 = scalar_lea.vmem %s13, %s513
        %p515 = scmp.lt.s32.totalorder %s35, 1
        %s516 = scalar_select %p515, %s35, 1
        %s517 = smul.addr %s516, 8
        %s518 = scalar_lea.vmem %s1, %s517
        %p519 = scmp.lt.s32.totalorder %s35, 1
        %s520 = scalar_select %p519, %s35, 1
        %s521 = smul.addr %s520, 8
        %s522 = scalar_lea.vmem %s13, %s521
        %v523 = vld [vmem:[%s451] sm:$0xff]
        %vm524 = vcmask 261120
        %v525 = vsel %vm524, %v523, 0.0
        %526 = vadd.xlane.f32.xlu0 %v525
        %v527 = vpop.xlane.xlu0 %526
        %v528 = vrcp.pop 32.0
        %v529 = vmul.f32 %v527, %v528
        %v530 = vsub.f32 %v523, %v529
        %v531 = vmul.f32 %v530, %v530
        %v532 = vsel %vm524, %v531, 0.0
        %533 = vadd.xlane.f32.xlu0 %v532
        %v534 = vpop.xlane.xlu0 %533
        %v535 = vmul.f32 %v534, %v528
        %v536 = vadd.f32 %v535, 1e-05
        %v537 = vrsqrt.pop %v536
        %v538 = vmul.f32 %v530, %v537
        %v539 = vld [vmem:[%s2] sm:$0x1]
        %v541 = vlaneseq
        %v542 = vshrl.u32 %v541, 7
        %v543 = vsub.s32 0, %v542
        %v544 = vrot.slane %v539, %v543
        %v546 = vmul.f32 %v538, %v544
        %v547 = vld [vmem:[%s3] sm:$0x1]
        %v549 = vlaneseq
        %v550 = vshrl.u32 %v549, 7
        %v551 = vsub.s32 0, %v550
        %v552 = vrot.slane %v547, %v551
        %v554 = vadd.f32 %v546, %v552
        %v555 = vld [vmem:[%s4] sm:$0xff]
        %v556 = vld [vmem:[%s4 + $0x8] sm:$0xff]
        %v557 = vld [vmem:[%s4 + $0x10] sm:$0xff]
        %v558 = vld [vmem:[%s4 + $0x18] sm:$0xff]
        %v559 = vld [vmem:[%s5] sm:$0x1]
        %v561 = vlaneseq
        %v562 = vshrl.u32 %v561, 7
        %v563 = vsub.s32 0, %v562
        %v564 = vrot.slane %v559, %v563
        %v567 = vsel %vm524, %v554, 0
        %569 = vmatprep.subr.mxu0 0.0
        %570 = vmatpush1.msra.mxu0 0.0
        %571 = vmatprep.subr.mxu0 0.0
        %572 = vmatpush1.msra.mxu0 0.0
        %573 = vmatprep.subr.mxu0 0.0
        %574 = vmatpush1.msra.mxu0 0.0
        %575 = vmatprep.subr.mxu0 0.0
        %576 = vmatpush1.msra.mxu0 0.0
        %577 = vmatprep.subr.mxu0 0.0
        %578 = vmatpush1.msra.mxu0 0.0
        %579 = vmatprep.subr.mxu0 0.0
        %580 = vmatpush1.msra.mxu0 0.0
        %581 = vmatprep.subr.mxu0 0.0
        %582 = vmatpush1.msra.mxu0 0.0
        %583 = vmatprep.subr.mxu0 0.0
        %584 = vmatpush1.msra.mxu0 0.0
        %585 = vmatprep.subr.mxu0 0.0
        %586 = vmatpush1.msra.mxu0 0.0
        %587 = vmatprep.subr.mxu0 0.0
        %588 = vmatpush1.msra.mxu0 0.0
        %589 = vmatprep.subr.mxu0 0.0
        %590 = vmatpush1.msra.mxu0 0.0
        %591 = vmatprep.subr.mxu0 0.0
        %592 = vmatpush1.msra.mxu0 0.0
        %593 = vmatprep.subr.mxu0 0.0
        %594 = vmatpush1.msra.mxu0 %v558
        %595 = vmatprep.subr.mxu0 0.0
        %596 = vmatpush1.msra.mxu0 %v557
        %597 = vmatprep.subr.mxu0 0.0
        %598 = vmatpush1.msra.mxu0 %v556
        %599 = vmatprep.subr.mxu0 0.0
        %600 = vmatpush1.msra.mxu0 %v555
        %601 = vmatprep.subr.mxu0 0.0
        %602 = vmatpush2.msra.mxu0 0.0
        %603 = vmatprep.subr.mxu0 0.0
        %604 = vmatpush2.msra.mxu0 0.0
        %605 = vmatprep.subr.mxu0 0.0
        %606 = vmatpush2.msra.mxu0 0.0
        %607 = vmatprep.subr.mxu0 0.0
        %608 = vmatpush2.msra.mxu0 0.0
        %609 = vmatprep.subr.mxu0 0.0
        %610 = vmatpush2.msra.mxu0 0.0
        %611 = vmatprep.subr.mxu0 0.0
        %612 = vmatpush2.msra.mxu0 0.0
        %613 = vmatprep.subr.mxu0 0.0
        %614 = vmatpush2.msra.mxu0 0.0
        %615 = vmatprep.subr.mxu0 0.0
        %616 = vmatpush2.msra.mxu0 0.0
        %617 = vmatprep.subr.mxu0 0.0
        %618 = vmatpush2.msra.mxu0 0.0
        %619 = vmatprep.subr.mxu0 0.0
        %620 = vmatpush2.msra.mxu0 0.0
        %621 = vmatprep.subr.mxu0 0.0
        %622 = vmatpush2.msra.mxu0 0.0
        %623 = vmatprep.subr.mxu0 0.0
        %624 = vmatpush2.msra.mxu0 0.0
        %625 = vmatprep.subr.mxu0 0.0
        %626 = vmatpush2.msra.mxu0 0.0
        %627 = vmatprep.subr.mxu0 0.0
        %628 = vmatpush2.msra.mxu0 0.0
        %629 = vmatprep.subr.mxu0 0.0
        %630 = vmatpush2.msra.mxu0 0.0
        %631 = vmatprep.subr.mxu0 0.0
        %632 = vmatpush2.msra.mxu0 0.0
        %633 = vmatprep.mubr.f32.mxu0 0.0
        %634 = vmatmul.mubr.f32.gmra.mxu0 %v567
        %v635 = vpop.f32.mrf.mxu0
        %v636 = vadd.f32 %v564, %v635
        %v637 = vpop.f32.mrf.mxu0
        %638 = vdwg.mxu0
        %v639 = vmax.f32 %v636, 0.0
        %v640 = vld [vmem:[#allocation5] sm:$0xff]
        %v641 = vld [vmem:[#allocation5 + $0x8] sm:$0xff]
        %v642 = vld [vmem:[#allocation5 + $0x10] sm:$0xff]
        %v643 = vld [vmem:[#allocation5 + $0x18] sm:$0xff]
        %v644 = vld [vmem:[%s7] sm:$0x1]
        %v646 = vlaneseq
        %v647 = vshrl.u32 %v646, 7
        %v648 = vsub.s32 0, %v647
        %v649 = vrot.slane %v644, %v648
        %v652 = vsel %vm524, %v639, 0
        %654 = vmatprep.subr.mxu0 0.0
        %655 = vmatpush1.msra.mxu0 0.0
        %656 = vmatprep.subr.mxu0 0.0
        %657 = vmatpush1.msra.mxu0 0.0
        %658 = vmatprep.subr.mxu0 0.0
        %659 = vmatpush1.msra.mxu0 0.0
        %660 = vmatprep.subr.mxu0 0.0
        %661 = vmatpush1.msra.mxu0 0.0
        %662 = vmatprep.subr.mxu0 0.0
        %663 = vmatpush1.msra.mxu0 0.0
        %664 = vmatprep.subr.mxu0 0.0
        %665 = vmatpush1.msra.mxu0 0.0
        %666 = vmatprep.subr.mxu0 0.0
        %667 = vmatpush1.msra.mxu0 0.0
        %668 = vmatprep.subr.mxu0 0.0
        %669 = vmatpush1.msra.mxu0 0.0
        %670 = vmatprep.subr.mxu0 0.0
        %671 = vmatpush1.msra.mxu0 0.0
        %672 = vmatprep.subr.mxu0 0.0
        %673 = vmatpush1.msra.mxu0 0.0
        %674 = vmatprep.subr.mxu0 0.0
        %675 = vmatpush1.msra.mxu0 0.0
        %676 = vmatprep.subr.mxu0 0.0
        %677 = vmatpush1.msra.mxu0 0.0
        %678 = vmatprep.subr.mxu0 0.0
        %679 = vmatpush1.msra.mxu0 %v643
        %680 = vmatprep.subr.mxu0 0.0
        %681 = vmatpush1.msra.mxu0 %v642
        %682 = vmatprep.subr.mxu0 0.0
        %683 = vmatpush1.msra.mxu0 %v641
        %684 = vmatprep.subr.mxu0 0.0
        %685 = vmatpush1.msra.mxu0 %v640
        %686 = vmatprep.subr.mxu0 0.0
        %687 = vmatpush2.msra.mxu0 0.0
        %688 = vmatprep.subr.mxu0 0.0
        %689 = vmatpush2.msra.mxu0 0.0
        %690 = vmatprep.subr.mxu0 0.0
        %691 = vmatpush2.msra.mxu0 0.0
        %692 = vmatprep.subr.mxu0 0.0
        %693 = vmatpush2.msra.mxu0 0.0
        %694 = vmatprep.subr.mxu0 0.0
        %695 = vmatpush2.msra.mxu0 0.0
        %696 = vmatprep.subr.mxu0 0.0
        %697 = vmatpush2.msra.mxu0 0.0
        %698 = vmatprep.subr.mxu0 0.0
        %699 = vmatpush2.msra.mxu0 0.0
        %700 = vmatprep.subr.mxu0 0.0
        %701 = vmatpush2.msra.mxu0 0.0
        %702 = vmatprep.subr.mxu0 0.0
        %703 = vmatpush2.msra.mxu0 0.0
        %704 = vmatprep.subr.mxu0 0.0
        %705 = vmatpush2.msra.mxu0 0.0
        %706 = vmatprep.subr.mxu0 0.0
        %707 = vmatpush2.msra.mxu0 0.0
        %708 = vmatprep.subr.mxu0 0.0
        %709 = vmatpush2.msra.mxu0 0.0
        %710 = vmatprep.subr.mxu0 0.0
        %711 = vmatpush2.msra.mxu0 0.0
        %712 = vmatprep.subr.mxu0 0.0
        %713 = vmatpush2.msra.mxu0 0.0
        %714 = vmatprep.subr.mxu0 0.0
        %715 = vmatpush2.msra.mxu0 0.0
        %716 = vmatprep.subr.mxu0 0.0
        %717 = vmatpush2.msra.mxu0 0.0
        %718 = vmatprep.mubr.f32.mxu0 0.0
        %719 = vmatmul.mubr.f32.gmra.mxu0 %v652
        %v720 = vpop.f32.mrf.mxu0
        %v721 = vadd.f32 %v649, %v720
        %v722 = vpop.f32.mrf.mxu0
        %723 = vdwg.mxu0
        %v724 = vmax.f32 %v721, 0.0
        %v725 = vld [vmem:[#allocation7] sm:$0xff]
        %v726 = vld [vmem:[#allocation7 + $0x8] sm:$0xff]
        %v727 = vld [vmem:[#allocation7 + $0x10] sm:$0xff]
        %v728 = vld [vmem:[#allocation7 + $0x18] sm:$0xff]
        %v729 = vld [vmem:[%s9] sm:$0x1]
        %v731 = vlaneseq
        %v732 = vshrl.u32 %v731, 7
        %v733 = vsub.s32 0, %v732
        %v734 = vrot.slane %v729, %v733
        %v737 = vsel %vm524, %v724, 0
        %739 = vmatprep.subr.mxu0 0.0
        %740 = vmatpush1.msra.mxu0 0.0
        %741 = vmatprep.subr.mxu0 0.0
        %742 = vmatpush1.msra.mxu0 0.0
        %743 = vmatprep.subr.mxu0 0.0
        %744 = vmatpush1.msra.mxu0 0.0
        %745 = vmatprep.subr.mxu0 0.0
        %746 = vmatpush1.msra.mxu0 0.0
        %747 = vmatprep.subr.mxu0 0.0
        %748 = vmatpush1.msra.mxu0 0.0
        %749 = vmatprep.subr.mxu0 0.0
        %750 = vmatpush1.msra.mxu0 0.0
        %751 = vmatprep.subr.mxu0 0.0
        %752 = vmatpush1.msra.mxu0 0.0
        %753 = vmatprep.subr.mxu0 0.0
        %754 = vmatpush1.msra.mxu0 0.0
        %755 = vmatprep.subr.mxu0 0.0
        %756 = vmatpush1.msra.mxu0 0.0
        %757 = vmatprep.subr.mxu0 0.0
        %758 = vmatpush1.msra.mxu0 0.0
        %759 = vmatprep.subr.mxu0 0.0
        %760 = vmatpush1.msra.mxu0 0.0
        %761 = vmatprep.subr.mxu0 0.0
        %762 = vmatpush1.msra.mxu0 0.0
        %763 = vmatprep.subr.mxu0 0.0
        %764 = vmatpush1.msra.mxu0 %v728
        %765 = vmatprep.subr.mxu0 0.0
        %766 = vmatpush1.msra.mxu0 %v727
        %767 = vmatprep.subr.mxu0 0.0
        %768 = vmatpush1.msra.mxu0 %v726
        %769 = vmatprep.subr.mxu0 0.0
        %770 = vmatpush1.msra.mxu0 %v725
        %771 = vmatprep.subr.mxu0 0.0
        %772 = vmatpush2.msra.mxu0 0.0
        %773 = vmatprep.subr.mxu0 0.0
        %774 = vmatpush2.msra.mxu0 0.0
        %775 = vmatprep.subr.mxu0 0.0
        %776 = vmatpush2.msra.mxu0 0.0
        %777 = vmatprep.subr.mxu0 0.0
        %778 = vmatpush2.msra.mxu0 0.0
        %779 = vmatprep.subr.mxu0 0.0
        %780 = vmatpush2.msra.mxu0 0.0
        %781 = vmatprep.subr.mxu0 0.0
        %782 = vmatpush2.msra.mxu0 0.0
        %783 = vmatprep.subr.mxu0 0.0
        %784 = vmatpush2.msra.mxu0 0.0
        %785 = vmatprep.subr.mxu0 0.0
        %786 = vmatpush2.msra.mxu0 0.0
        %787 = vmatprep.subr.mxu0 0.0
        %788 = vmatpush2.msra.mxu0 0.0
        %789 = vmatprep.subr.mxu0 0.0
        %790 = vmatpush2.msra.mxu0 0.0
        %791 = vmatprep.subr.mxu0 0.0
        %792 = vmatpush2.msra.mxu0 0.0
        %793 = vmatprep.subr.mxu0 0.0
        %794 = vmatpush2.msra.mxu0 0.0
        %795 = vmatprep.subr.mxu0 0.0
        %796 = vmatpush2.msra.mxu0 0.0
        %797 = vmatprep.subr.mxu0 0.0
        %798 = vmatpush2.msra.mxu0 0.0
        %799 = vmatprep.subr.mxu0 0.0
        %800 = vmatpush2.msra.mxu0 0.0
        %801 = vmatprep.subr.mxu0 0.0
        %802 = vmatpush2.msra.mxu0 0.0
        %803 = vmatprep.mubr.f32.mxu0 0.0
        %804 = vmatmul.mubr.f32.gmra.mxu0 %v737
        %v805 = vpop.f32.mrf.mxu0
        %v806 = vadd.f32 %v734, %v805
        %v807 = vpop.f32.mrf.mxu0
        %808 = vdwg.mxu0
        %vm809 = vcmask 408576
        %v810 = vsel %vm809, %v806, -inf
        %811 = vmax.xlane.f32.xlu0 %v810
        %v812 = vpop.xlane.xlu0 %811
        %v813 = vsub.f32 %v806, %v812
        %v814 = vmul.f32 %v813, 1.442695
        %v815 = vpow.pop %v814
        %v816 = vsel %vm809, %v815, 0.0
        %817 = vadd.xlane.f32.xlu0 %v816
        %v818 = vpop.xlane.xlu0 %817
        %v819 = vrcp.pop %v818
        %v820 = vmul.f32 %v815, %v819
        %v821 = vld [vmem:[%s518] sm:$0xff]
        %v822 = vld [vmem:[%s10] sm:$0x1]
        %v824 = vlaneseq
        %v825 = vshrl.u32 %v824, 7
        %v826 = vsub.s32 0, %v825
        %v827 = vrot.slane %v822, %v826
        %v829 = vmul.f32 %v820, %v827
        %v830 = vsel %vm809, %v829, 0.0
        %831 = vadd.xlane.f32.xlu0 %v830
        %v832 = vpop.xlane.xlu0 %831
        %v833 = vmul.f32 %v832, %v821
        %834 = vst.msk [vmem:[%s501] sm:$0xff] %vm809, %v806
        %836 = vset.pattern.permute.xlu0 0
        %837 = vperm.xlu0 %836, %v821
        %v838 = vpop.permute.xlu0 %837
        %v840 = vmul.f32 %v820, %v838
        %841 = vst.msk [vmem:[%s508] sm:$0xff] %vm809, %v840
        %vm842 = vcmask 7168
        %843 = vst.msk [vmem:[%s522] sm:$0xff] %vm842, %v833
        %s844 = sand.u32 %s284, 1
        %s845 = scalar_lea.sflag [#allocation4], %s844
        %s846 = sand.u32 %s284, 1
        %s847 = smul.addr %s846, 8
        %s848 = scalar_lea.vmem [#allocation8], %s847
        %s849 = sand.u32 %s310, 1
        %s850 = scalar_lea.sflag [#allocation10], %s849
        %s851 = sand.u32 %s310, 1
        %s852 = smul.addr %s851, 8
        %s853 = scalar_lea.vmem [#allocation9], %s852
        %p854 = scmp.lt.s32.totalorder %s35, 1
        %s855 = scalar_select %p854, %s35, 1
        %s856 = smul.addr %s855, 8
        %s857 = scalar_lea.vmem %s13, %s856
        // Predicated region
        $region77: #{plddt_forward.1} parent=63 // pred_check
          %p858 = pneg %p294
        $region78: #{plddt_forward.1} parent=63 // pred_check_branch
          %860 = sbr.rel (%p858) target = $region80
        $region79: #{plddt_forward.1} parent=63 // pred_region
          %s862 = ssub.s32 128, 128
          %863 = vsyncadd %s845, %s862
          %s864 = smul.addr %s35, 128
          %s865 = scalar_lea.hbm %s11, %s864
          %s867 = sshll.u32 %s848, 4
          %s868 = int_to_ptr.vmem [resolvable:$true] %s867
          %870 = dma.vmem_to_hbm [thread:$0]  %s868, 128, %s865, %s845
        $region80: #{plddt_forward.1} parent=63 // pred_fallthru
          _
        // Predicated region
        $region81: #{plddt_forward.1} parent=63 // pred_check
          %p871 = pneg %p320
        $region82: #{plddt_forward.1} parent=63 // pred_check_branch
          %873 = sbr.rel (%p871) target = $region84
        $region83: #{plddt_forward.1} parent=63 // pred_region
          %s875 = ssub.s32 128, 128
          %876 = vsyncadd %s850, %s875
          %s877 = smul.addr %s35, 128
          %s878 = scalar_lea.hbm %s12, %s877
          %s880 = sshll.u32 %s853, 4
          %s881 = int_to_ptr.vmem [resolvable:$true] %s880
          %883 = dma.vmem_to_hbm [thread:$0]  %s881, 128, %s878, %s850
        $region84: #{plddt_forward.1} parent=63 // pred_fallthru
          _
        // Predicated region
        $region85: #{plddt_forward.1} parent=63 // pred_check
          %p884 = pneg %p346
        $region86: #{plddt_forward.1} parent=63 // pred_check_branch
          %886 = sbr.rel (%p884) target = $region88
        $region87: #{plddt_forward.1} parent=63 // pred_region
          _
        $region88: #{plddt_forward.1} parent=63 // pred_fallthru
          _
      $region64: #{plddt_forward.1} parent=5 // pred_fallthru
        _
      %p887 = scmp.le.s32.totalorder 2, %s30
      // Predicated region
      $region89: #{plddt_forward.1} parent=5 // pred_check
        %p888 = pneg %p887
      $region90: #{plddt_forward.1} parent=5 // pred_check_branch
        %890 = sbr.rel (%p888) target = $region92
      $region91: #{plddt_forward.1} parent=5 // pred_region
        %s891 = ssub.s32 %s30, 2
        // Predicated region
        $region93: #{plddt_forward.1} parent=91 // pred_check
          %p892 = pneg %p300
        $region94: #{plddt_forward.1} parent=91 // pred_check_branch
          %894 = sbr.rel (%p892) target = $region96
        $region95: #{plddt_forward.1} parent=91 // pred_region
          %s895 = sand.u32 %s285, 1
          %s896 = scalar_lea.sflag [#allocation4], %s895
          %s897 = sand.u32 %s285, 1
          %s898 = smul.addr %s897, 8
          %s899 = scalar_lea.vmem [#allocation8], %s898
          %900 = dma.done %s896, 128
        $region96: #{plddt_forward.1} parent=91 // pred_fallthru
          _
        // Predicated region
        $region97: #{plddt_forward.1} parent=91 // pred_check
          %p901 = pneg %p326
        $region98: #{plddt_forward.1} parent=91 // pred_check_branch
          %903 = sbr.rel (%p901) target = $region100
        $region99: #{plddt_forward.1} parent=91 // pred_region
          %s904 = sand.u32 %s311, 1
          %s905 = scalar_lea.sflag [#allocation10], %s904
          %s906 = sand.u32 %s311, 1
          %s907 = smul.addr %s906, 8
          %s908 = scalar_lea.vmem [#allocation9], %s907
          %909 = dma.done %s905, 128
        $region100: #{plddt_forward.1} parent=91 // pred_fallthru
          _
        // Predicated region
        $region101: #{plddt_forward.1} parent=91 // pred_check
          %p910 = pneg %p352
        $region102: #{plddt_forward.1} parent=91 // pred_check_branch
          %912 = sbr.rel (%p910) target = $region104
        $region103: #{plddt_forward.1} parent=91 // pred_region
          %p913 = scmp.lt.s32.totalorder %s36, 1
          %s914 = scalar_select %p913, %s36, 1
          %s915 = smul.addr %s914, 8
          %s916 = scalar_lea.vmem %s13, %s915
        $region104: #{plddt_forward.1} parent=91 // pred_fallthru
          _
      $region92: #{plddt_forward.1} parent=5 // pred_fallthru
        _
    $region6: #{plddt_forward.1} parent=1 // loop_footer
      %s34 = sadd.s32 1, %s30
    $region7: #{plddt_forward.1} parent=1 // loop_footer_branch
      %29 = sbr.rel target = $region3
    $region8: #{plddt_forward.1} parent=1 // loop_exit
      _
    %917 = vsyncpa [#allocation3], 1
    %s918 = scalar_lea.sflag [#allocation3], 1
    %919 = vsyncpa %s918, 1
    %920 = vsyncpa [#allocation6], 1
    %921 = vsyncpa [#allocation4], 1
    %s922 = scalar_lea.sflag [#allocation4], 1
    %923 = vsyncpa %s922, 1
    %924 = vsyncpa [#allocation10], 1
    %s925 = scalar_lea.sflag [#allocation10], 1
    %926 = vsyncpa %s925, 1

</llo_original>
